<compile_context>
chip_gen: v7x
topology: tpu7x:2x2x1
jax: 0.10.0
libtpu: 0.0.40
codegen_flags: <defaults>
</compile_context>

<pallas_src>
import functools
import math

import jax
import jax.numpy as jnp
from jax.experimental import pallas as pl
from jax.experimental.pallas import tpu as pltpu


def _round_up(v, m):
    return (v + m - 1) // m * m


@functools.lru_cache(maxsize=1)
def _vmem_capacity_bytes():
    """Physical VMEM of the current generation (fallback: 64 MiB, v7x per-TC)."""
    try:
        return int(pltpu.get_tpu_info().vmem_capacity_bytes)
    except Exception:
        return 64 * 1024 * 1024


def _sublane_floor(itemsize):
    # Minimum second-to-last tile dim per dtype packing (f32 / bf16 / int8).
    return {4: 8, 2: 16, 1: 32}.get(itemsize, 8)


def _single_buffer_consts(h, tn, itemsize):
    # Single-buffer the constant-index weight/bias only when the whole weight
    # is resident (tn == h) and large enough for the saving to matter.
    return tn == h and h * h * itemsize >= (1 << 20)


def _select_tiles(m, h, itemsize):
    """Pick (TM, TN) row/column tiles against the per-generation VMEM budget."""
    budget = int(_vmem_capacity_bytes() * 0.75)
    floor = _sublane_floor(itemsize)

    if h % 128 == 0:
        # Lane-aligned: column panels that exactly divide H (no masking, no OOB
        # residual slice inside the kernel).
        tn_cands = sorted({t for t in (h, 1024, 512, 256, 128)
                           if t <= h and h % t == 0}, reverse=True)
    else:
        # Small / odd H: one full-width panel (block dim == full array dim).
        tn_cands = [h]

    def vmem_bytes(tm, tn):
        nbuf_w = 1 if _single_buffer_consts(h, tn, itemsize) else 2
        x_buf = 2 * tm * h          # double-buffered activation tile
        o_buf = 2 * tm * tn         # double-buffered output tile
        w_buf = nbuf_w * h * tn     # weight panel(s)
        b_buf = nbuf_w * 8 * tn     # bias row, padded to 8 sublanes
        return itemsize * (x_buf + o_buf + w_buf + b_buf)

    best = None
    for tn in tn_cands:
        tm = 1024
        while tm > floor and vmem_bytes(tm, tn) > budget:
            tm //= 2
        fits = vmem_bytes(tm, tn) <= budget
        key = (fits, tm, tn)
        if best is None or key > best[0]:
            best = (key, tm, tn)
        if fits and tm >= 256:
            break  # widest panel that still allows a big (>=256) row tile
    _, tm, tn = best
    return tm, tn, floor


def _skip_linear_kernel(x_ref, w_ref, b_ref, o_ref, *, tn, h):
    # x_ref: (TM, H)  w_ref: (H, TN)  b_ref: (1, TN)  o_ref: (TM, TN)
    x = x_ref[...]
    # MXU matmul with f32 accumulation.
    y = jnp.dot(x, w_ref[...], preferred_element_type=jnp.float32)
    if tn == h:
        resid = x
    else:
        j = pl.program_id(1)
        col = pl.multiple_of(j * tn, tn)
        resid = x_ref[:, pl.ds(col, tn)]   # in-bounds: tn divides h
    # Residual + bias fused into a single VPU epilogue pass.
    o_ref[...] = (resid.astype(jnp.float32) + y
                  + b_ref[...].astype(jnp.float32)).astype(o_ref.dtype)


@jax.jit
def skip_connection_linear(x, w, b):
    """out = x + (x @ w + b); x: (B, S, H), w: (H, H), b: (H,)."""
    B, S, H = x.shape
    M = B * S
    dtype = x.dtype
    itemsize = jnp.dtype(dtype).itemsize

    TM, TN, floor = _select_tiles(M, H, itemsize)

    # Clamp the row tile to the problem and force >= 2 row steps so v7x's two
    # TensorCores both get work (harmless on single-TC v5e/v6e).
    TM = min(TM, _round_up(M, floor))
    if pl.cdiv(M, TM) < 2 and M > floor:
        TM = _round_up(pl.cdiv(M, 2), floor)

    ni = pl.cdiv(M, TM)    # ragged rows: Pallas masks the partial last block
    nj = pl.cdiv(H, TN)    # TN divides H (or TN == H): no column masking

    x2d = x.reshape(M, H)  # pure reshape: no copy, no pad, no slice
    b2d = b.reshape(1, H)

    w_map = lambda i, j: (0, j)
    b_map = lambda i, j: (0, j)
    if nj == 1 and _single_buffer_consts(H, TN, itemsize):
        # Constant index across the whole grid -> a single VMEM buffer suffices.
        w_spec = pl.BlockSpec((H, TN), w_map, pipeline_mode=pl.Buffered(1))
        b_spec = pl.BlockSpec((1, TN), b_map, pipeline_mode=pl.Buffered(1))
    else:
        w_spec = pl.BlockSpec((H, TN), w_map)
        b_spec = pl.BlockSpec((1, TN), b_map)

    vmem_cap = _vmem_capacity_bytes()
    w_traffic = H * H if nj == 1 else ni * H * H
    flops = 2 * M * H * H + 2 * M * H
    bytes_accessed = itemsize * (2 * M * H + w_traffic + H)

    out2d = pl.pallas_call(
        functools.partial(_skip_linear_kernel, tn=TN, h=H),
        out_shape=jax.ShapeDtypeStruct((M, H), dtype),
        grid_spec=pltpu.PrefetchScalarGridSpec(
            num_scalar_prefetch=0,
            grid=(ni, nj),
            in_specs=[
                # Activations: row-tiled, resident across the column axis.
                pl.BlockSpec((TM, H), lambda i, j: (i, 0)),
                w_spec,
                b_spec,
            ],
            out_specs=pl.BlockSpec((TM, TN), lambda i, j: (i, j)),
        ),
        compiler_params=pltpu.CompilerParams(
            dimension_semantics=("parallel", "arbitrary"),
            vmem_limit_bytes=int(vmem_cap * 0.85),
        ),
        cost_estimate=pl.CostEstimate(
            flops=flops, transcendentals=0, bytes_accessed=bytes_accessed),
    )(x2d, w, b2d)

    return out2d.reshape(B, S, H)


if __name__ == "__main__":
    key = jax.random.PRNGKey(0)
    k_x, k_w, k_b = jax.random.split(key, 3)

    B, S, H = 2, 8, 32
    x = jax.random.normal(k_x, (B, S, H), dtype=jnp.float32)

    # Deterministic parameter init for the wrapped Linear(H, H).
    bound = 1.0 / math.sqrt(H)
    w = jax.random.uniform(k_w, (H, H), dtype=jnp.float32,
                           minval=-bound, maxval=bound)
    b = jax.random.uniform(k_b, (H,), dtype=jnp.float32,
                           minval=-bound, maxval=bound)

    out = jax.block_until_ready(skip_connection_linear(x, w, b))

    # Pure-JAX reference: input + module(input)
    ref = x + (jnp.einsum("bsh,hk->bsk", x, w) + b)
    assert out.shape == ref.shape
    assert jnp.allclose(out, ref, atol=1e-5, rtol=1e-5), "mismatch vs reference"

    print("KERNEL_OK")
</pallas_src>

<mosaic_0001>
module attributes {stable_mosaic.version = 11 : i64} {
  func.func @_skip_linear_kernel(%arg0: i32, %arg1: i32, %arg2: memref<8x32xf32, #tpu.memory_space<vmem>>, %arg3: memref<32x32xf32, #tpu.memory_space<vmem>>, %arg4: memref<1x32xf32, #tpu.memory_space<vmem>>, %arg5: memref<8x32xf32, #tpu.memory_space<vmem>>) attributes {dimension_semantics = [#tpu.dimension_semantics<parallel>, #tpu.dimension_semantics<arbitrary>], iteration_bounds = array<i64: 2, 1>, scalar_prefetch = 0 : i64, scratch_operands = 0 : i64, tpu.core_type = #tpu.core_type<tc>, window_params = [{transform_indices = @transform_0, window_bounds = array<i64: 8, 32>}, {transform_indices = @transform_1, window_bounds = array<i64: 32, 32>}, {transform_indices = @transform_2, window_bounds = array<i64: 1, 32>}, {transform_indices = @transform_3, window_bounds = array<i64: 8, 32>}]} {
    %c0 = arith.constant 0 : index
    %c0_0 = arith.constant 0 : index
    %0 = vector.load %arg2[%c0, %c0_0] : memref<8x32xf32, #tpu.memory_space<vmem>>, vector<8x32xf32>
    %c0_1 = arith.constant 0 : index
    %c0_2 = arith.constant 0 : index
    %1 = vector.load %arg3[%c0_1, %c0_2] : memref<32x32xf32, #tpu.memory_space<vmem>>, vector<32x32xf32>
    %cst = arith.constant dense<0.000000e+00> : vector<8x32xf32>
    %2 = tpu.matmul %0, %1, %cst {dimension_numbers = #tpu.dot_dimension_numbers<[1], [0], [0], [1], [0, 0, 1, 1], [], []>} : vector<8x32xf32>, vector<32x32xf32>, vector<8x32xf32> -> vector<8x32xf32>
    %3 = arith.addf %0, %2 : vector<8x32xf32>
    %c0_3 = arith.constant 0 : index
    %c0_4 = arith.constant 0 : index
    %4 = vector.load %arg4[%c0_3, %c0_4] : memref<1x32xf32, #tpu.memory_space<vmem>>, vector<1x32xf32>
    %5 = vector.broadcast %4 : vector<1x32xf32> to vector<8x32xf32>
    %6 = arith.addf %3, %5 : vector<8x32xf32>
    %c0_5 = arith.constant 0 : index
    %c0_6 = arith.constant 0 : index
    %7 = vector.load %arg5[%c0_5, %c0_6] : memref<8x32xf32, #tpu.memory_space<vmem>>, vector<8x32xf32>
    tpu.vector_store %arg5[%c0_5, %c0_6], %6 {strides = array<i32>} : memref<8x32xf32, #tpu.memory_space<vmem>>, vector<8x32xf32>,
    return
  }
  func.func @transform_0(%arg0: i32, %arg1: i32) -> (i32, i32) {
    %c0_i32 = arith.constant 0 : i32
    %c0_i32_0 = arith.constant 0 : i32
    return %arg0, %c0_i32 : i32, i32
  }
  func.func @transform_1(%arg0: i32, %arg1: i32) -> (i32, i32) {
    %c0_i32 = arith.constant 0 : i32
    %c0_i32_0 = arith.constant 0 : i32
    return %c0_i32, %arg1 : i32, i32
  }
  func.func @transform_2(%arg0: i32, %arg1: i32) -> (i32, i32) {
    %c0_i32 = arith.constant 0 : i32
    %c0_i32_0 = arith.constant 0 : i32
    return %c0_i32, %arg1 : i32, i32
  }
  func.func @transform_3(%arg0: i32, %arg1: i32) -> (i32, i32) {
    %c0_i32 = arith.constant 0 : i32
    return %arg0, %arg1 : i32, i32
  }
}

</mosaic_0001>

<llo_original>
// kernel: skip_connection_linear.1
$region0: #{skip_connection_linear.1}
  #allocation0 [shape = 'u32[]', space=smem, size = 0x4, offset = 0x4, fixed_abs, tag = 'smem constant byte address 0x4 - core index']
  #allocation1 [shape = 'u32[144,128]{1,0:T(1,128)}', space=vmem, size = 0x12000, scoped, tag = 'internal scratch']
  %s0 = inlined_call_operand.hbm [shape: f32[16,32], index: 0, kind: input, shape index: {}]
  %s1 = inlined_call_operand.hbm [shape: f32[32,32], index: 1, kind: input, shape index: {}]
  %s2 = inlined_call_operand.vmem [shape: f32[1,32], index: 2, kind: input, shape index: {}]
  %s3 = inlined_call_operand.hbm [shape: f32[16,32], index: 3, kind: output, shape index: {}]
  %s4 = sld [smem:[#allocation0]]
  $region53: #{skip_connection_linear.1} parent=0
    _
  %s6 = ssub.s32 1, %s4
  %s7 = scalar_select 0, %s6, %s4
  $region1: #{skip_connection_linear.1} parent=0
    #allocation2 [shape = 'u8[8192]{0}', space=vmem, size = 0x2000, scoped, tag = 'input window, operand 0']
    #allocation3 [shape = 's32[2]{0}', space=sflag, size = 0x8, scoped, tag = 'scoped memory for skip_connection_linear.1']
    #allocation4 [shape = 's32[2]{0}', space=sflag, size = 0x8, scoped, tag = 'scoped memory for skip_connection_linear.1']
    #allocation5 [shape = 'u8[16384]{0}', space=vmem, size = 0x4000, scoped, tag = 'input window, operand 1, single buffered']
    #allocation6 [shape = 's32[1]{0}', space=sflag, size = 0x4, scoped, tag = 'scoped memory for skip_connection_linear.1']
    #allocation7 [shape = 'u8[8192]{0}', space=vmem, size = 0x2000, scoped, tag = 'output window, operand 0']
    %8 = vsyncpa [#allocation3], 0
    %s9 = scalar_lea.sflag [#allocation3], 1
    %10 = vsyncpa %s9, 0
    %11 = vsyncpa [#allocation6], 0
    %12 = vsyncpa [#allocation4], 0
    %s13 = scalar_lea.sflag [#allocation4], 1
    %14 = vsyncpa %s13, 0
    loop: start=0, step=1, limit=4
    $region2: #{skip_connection_linear.1} parent=1 // loop_pre_header
      _
    $region3: #{skip_connection_linear.1} parent=1 // loop_header
      %s16 = sphi 0, %s20
      %p17 = scmp.ge.s32.totalorder %s16, 4
      %s23 = sphi 0, %s35
      %s24 = sphi 0, %s31
      %s25 = sphi 0, %s23
      %s26 = sphi 0, %s24
      %s27 = sphi 0, %s25
      %s28 = sphi 0, %s26
      %s38 = sphi 0, %s40
      %s41 = sphi 0, %s38
      %s42 = sphi 0, %s41
      %s58 = sphi 0, %s42
      %s64 = sphi 0, %s66
      %s67 = sphi 0, %s64
      %s68 = sphi 0, %s67
      %s84 = sphi 0, %s68
      %s90 = sphi 0, %s92
      %s93 = sphi 0, %s90
      %s94 = sphi 0, %s93
      %s110 = sphi 0, %s94
      %s118 = sphi 0, %s120
      %s121 = sphi 0, %s118
      %s122 = sphi 0, %s121
      %s138 = sphi 0, %s122
    $region4: #{skip_connection_linear.1} parent=1 // loop_header_branch
      %19 = sbr.rel (%p17) target = $region8
    $region5: #{skip_connection_linear.1} parent=1 // loop_body
      %s21 = ssub.s32 %s16, 1
      %s22 = ssub.s32 %s16, 2
      %s29 = sadd.s32 1, %s24
      %p30 = scmp.ge.s32.totalorder %s29, 1
      %s31 = scalar_select %p30, 0, %s29
      %s32 = sadd.s32 1, %s23
      %s33 = scalar_select %p30, %s32, %s23
      %p34 = scmp.ge.s32.totalorder %s33, 2
      %s35 = scalar_select %p34, 0, %s33
      %s36 = ssub.s32 %s23, %s35
      %p37 = scmp.eq.s32.totalorder %s36, 0
      %s39 = sadd.s32 %s38, 1
      %s40 = scalar_select %p37, %s38, %s39
      %p43 = pneg %p37
      %p44 = scmp.eq.s32.totalorder %s16, 1
      %p45 = por %p43, %p44
      %p46 = scmp.ne.s32.totalorder %s38, %s41
      %p47 = scmp.eq.s32.totalorder %s16, 0
      %p48 = por %p46, %p47
      %p49 = scmp.ne.s32.totalorder %s38, %s41
      %p50 = scmp.eq.s32.totalorder %s21, 1
      %p51 = por %p49, %p50
      %p52 = scmp.ne.s32.totalorder %s41, %s42
      %p53 = scmp.eq.s32.totalorder %s21, 0
      %p54 = por %p52, %p53
      %p55 = scmp.ne.s32.totalorder %s41, %s42
      %p56 = scmp.eq.s32.totalorder %s22, 1
      %p57 = por %p55, %p56
      %p59 = scmp.ne.s32.totalorder %s42, %s58
      %p60 = scmp.eq.s32.totalorder %s22, 0
      %p61 = por %p59, %p60
      %s62 = ssub.s32 %s24, %s31
      %p63 = scmp.eq.s32.totalorder %s62, 0
      %s65 = sadd.s32 %s64, 1
      %s66 = scalar_select %p63, %s64, %s65
      %p69 = pneg %p63
      %p70 = scmp.eq.s32.totalorder %s16, 1
      %p71 = por %p69, %p70
      %p72 = scmp.ne.s32.totalorder %s64, %s67
      %p73 = scmp.eq.s32.totalorder %s16, 0
      %p74 = por %p72, %p73
      %p75 = scmp.ne.s32.totalorder %s64, %s67
      %p76 = scmp.eq.s32.totalorder %s21, 1
      %p77 = por %p75, %p76
      %p78 = scmp.ne.s32.totalorder %s67, %s68
      %p79 = scmp.eq.s32.totalorder %s21, 0
      %p80 = por %p78, %p79
      %p81 = scmp.ne.s32.totalorder %s67, %s68
      %p82 = scmp.eq.s32.totalorder %s22, 1
      %p83 = por %p81, %p82
      %p85 = scmp.ne.s32.totalorder %s68, %s84
      %p86 = scmp.eq.s32.totalorder %s22, 0
      %p87 = por %p85, %p86
      %s88 = ssub.s32 %s24, %s31
      %p89 = scmp.eq.s32.totalorder %s88, 0
      %s91 = sadd.s32 %s90, 1
      %s92 = scalar_select %p89, %s90, %s91
      %p95 = pneg %p89
      %p96 = scmp.eq.s32.totalorder %s16, 1
      %p97 = por %p95, %p96
      %p98 = scmp.ne.s32.totalorder %s90, %s93
      %p99 = scmp.eq.s32.totalorder %s16, 0
      %p100 = por %p98, %p99
      %p101 = scmp.ne.s32.totalorder %s90, %s93
      %p102 = scmp.eq.s32.totalorder %s21, 1
      %p103 = por %p101, %p102
      %p104 = scmp.ne.s32.totalorder %s93, %s94
      %p105 = scmp.eq.s32.totalorder %s21, 0
      %p106 = por %p104, %p105
      %p107 = scmp.ne.s32.totalorder %s93, %s94
      %p108 = scmp.eq.s32.totalorder %s22, 1
      %p109 = por %p107, %p108
      %p111 = scmp.ne.s32.totalorder %s94, %s110
      %p112 = scmp.eq.s32.totalorder %s22, 0
      %p113 = por %p111, %p112
      %s114 = ssub.s32 %s23, %s35
      %s115 = ssub.s32 %s24, %s31
      %s116 = sor.u32 %s114, %s115
      %p117 = scmp.eq.s32.totalorder %s116, 0
      %s119 = sadd.s32 %s118, 1
      %s120 = scalar_select %p117, %s118, %s119
      %p123 = pneg %p117
      %p124 = scmp.eq.s32.totalorder %s16, 1
      %p125 = por %p123, %p124
      %p126 = scmp.ne.s32.totalorder %s118, %s121
      %p127 = scmp.eq.s32.totalorder %s16, 0
      %p128 = por %p126, %p127
      %p129 = scmp.ne.s32.totalorder %s118, %s121
      %p130 = scmp.eq.s32.totalorder %s21, 1
      %p131 = por %p129, %p130
      %p132 = scmp.ne.s32.totalorder %s121, %s122
      %p133 = scmp.eq.s32.totalorder %s21, 0
      %p134 = por %p132, %p133
      %p135 = scmp.ne.s32.totalorder %s121, %s122
      %p136 = scmp.eq.s32.totalorder %s22, 1
      %p137 = por %p135, %p136
      %p139 = scmp.ne.s32.totalorder %s122, %s138
      %p140 = scmp.eq.s32.totalorder %s22, 0
      %p141 = por %p139, %p140
      %p142 = scmp.le.s32.totalorder 1, %s16
      %p143 = scmp.lt.s32.totalorder %s16, 3
      %p144 = pnand %p142, %p143
      %p145 = pneg %p144
      // Predicated region
      $region9: #{skip_connection_linear.1} parent=5 // pred_check
        _
      $region10: #{skip_connection_linear.1} parent=5 // pred_check_branch
        %147 = sbr.rel (%p144) target = $region12
      $region11: #{skip_connection_linear.1} parent=5 // pred_region
        %s148 = ssub.s32 %s16, 1
        // Predicated region
        $region13: #{skip_connection_linear.1} parent=11 // pred_check
          %p149 = pneg %p80
        $region14: #{skip_connection_linear.1} parent=11 // pred_check_branch
          %151 = sbr.rel (%p149) target = $region16
        $region15: #{skip_connection_linear.1} parent=11 // pred_region
          %s153 = ssub.s32 512, 512
          %154 = vsyncadd [#allocation6], %s153
          %s155 = smul.addr %s26, 128
          %s156 = scalar_lea.hbm %s1, %s155
          %s157 = sshll.u32 [#allocation5], 4
          %s158 = int_to_ptr.vmem [resolvable:$true] %s157
          %163 = dma.hbm_to_vmem [thread:$0]  %s156, 512, %s158, [#allocation6], 128, 128, 8
        $region16: #{skip_connection_linear.1} parent=11 // pred_fallthru
          _
        // Predicated region
        $region17: #{skip_connection_linear.1} parent=11 // pred_check
          %p164 = pneg %p106
        $region18: #{skip_connection_linear.1} parent=11 // pred_check_branch
          %166 = sbr.rel (%p164) target = $region20
        $region19: #{skip_connection_linear.1} parent=11 // pred_region
          %p167 = scmp.lt.s32.totalorder %s26, 0
          %s168 = scalar_select %p167, %s26, 0
          %s169 = scalar_lea.vmem %s2, %s168
        $region20: #{skip_connection_linear.1} parent=11 // pred_fallthru
          _
      $region12: #{skip_connection_linear.1} parent=5 // pred_fallthru
        _
      %p170 = scmp.lt.s32.totalorder %s16, 2
      // Predicated region
      $region21: #{skip_connection_linear.1} parent=5 // pred_check
        %p171 = pneg %p170
      $region22: #{skip_connection_linear.1} parent=5 // pred_check_branch
        %173 = sbr.rel (%p171) target = $region24
      $region23: #{skip_connection_linear.1} parent=5 // pred_region
        // Predicated region
        $region25: #{skip_connection_linear.1} parent=23 // pred_check
          %p174 = pneg %p48
        $region26: #{skip_connection_linear.1} parent=23 // pred_check_branch
          %176 = sbr.rel (%p174) target = $region28
        $region27: #{skip_connection_linear.1} parent=23 // pred_region
          %s177 = sand.u32 %s38, 1
          %s178 = scalar_lea.sflag [#allocation3], %s177
          %s179 = sand.u32 %s38, 1
          %s180 = smul.addr %s179, 8
          %s181 = scalar_lea.vmem [#allocation2], %s180
          %s183 = ssub.s32 128, 128
          %184 = vsyncadd %s178, %s183
          %s185 = smul.addr %s23, 128
          %s186 = scalar_lea.hbm %s0, %s185
          %s188 = sshll.u32 %s181, 4
          %s189 = int_to_ptr.vmem [resolvable:$true] %s188
          %191 = dma.hbm_to_vmem [thread:$0]  %s186, 128, %s189, %s178
        $region28: #{skip_connection_linear.1} parent=23 // pred_fallthru
          _
      $region24: #{skip_connection_linear.1} parent=5 // pred_fallthru
        _
      %p192 = scmp.le.s32.totalorder 1, %s16
      %p193 = scmp.lt.s32.totalorder %s16, 3
      %p194 = pnand %p192, %p193
      %p195 = pneg %p194
      // Predicated region
      $region29: #{skip_connection_linear.1} parent=5 // pred_check
        _
      $region30: #{skip_connection_linear.1} parent=5 // pred_check_branch
        %197 = sbr.rel (%p194) target = $region32
      $region31: #{skip_connection_linear.1} parent=5 // pred_region
        %s198 = ssub.s32 %s16, 1
        %s199 = sand.u32 %s41, 1
        %s200 = scalar_lea.sflag [#allocation3], %s199
        %s201 = sand.u32 %s41, 1
        %s202 = smul.addr %s201, 8
        %s203 = scalar_lea.vmem [#allocation2], %s202
        // Predicated region
        $region33: #{skip_connection_linear.1} parent=31 // pred_check
          %p204 = pneg %p54
        $region34: #{skip_connection_linear.1} parent=31 // pred_check_branch
          %206 = sbr.rel (%p204) target = $region36
        $region35: #{skip_connection_linear.1} parent=31 // pred_region
          %207 = dma.done %s200, 128
        $region36: #{skip_connection_linear.1} parent=31 // pred_fallthru
          _
        // Predicated region
        $region37: #{skip_connection_linear.1} parent=31 // pred_check
          %p208 = pneg %p80
        $region38: #{skip_connection_linear.1} parent=31 // pred_check_branch
          %210 = sbr.rel (%p208) target = $region40
        $region39: #{skip_connection_linear.1} parent=31 // pred_region
          %211 = dma.done [#allocation6], 512
        $region40: #{skip_connection_linear.1} parent=31 // pred_fallthru
          _
        %s212 = sand.u32 %s41, 1
        %s213 = scalar_lea.sflag [#allocation3], %s212
        %s214 = sand.u32 %s41, 1
        %s215 = smul.addr %s214, 8
        %s216 = scalar_lea.vmem [#allocation2], %s215
        %p217 = pneg %p54
        %p218 = pneg %p51
        %p219 = pneg %p80
        %p220 = pneg %p77
        %p221 = scmp.lt.s32.totalorder %s26, 0
        %s222 = scalar_select %p221, %s26, 0
        %s223 = scalar_lea.vmem %s2, %s222
        %p224 = pneg %p106
        %p225 = pneg %p103
        %p226 = pneg %p134
        %p227 = pneg %p131
        %s228 = sand.u32 %s121, 1
        %s229 = scalar_lea.sflag [#allocation4], %s228
        %s230 = sand.u32 %s121, 1
        %s231 = smul.addr %s230, 8
        %s232 = scalar_lea.vmem [#allocation7], %s231
        %p233 = scmp.lt.s32.totalorder %s26, 0
        %s234 = scalar_select %p233, %s26, 0
        %s235 = scalar_lea.vmem %s2, %s234
        %v236 = vld [vmem:[%s203] sm:$0xff]
        %v237 = vld [vmem:[#allocation5] sm:$0xff]
        %v238 = vld [vmem:[#allocation5 + $0x8] sm:$0xff]
        %v239 = vld [vmem:[#allocation5 + $0x10] sm:$0xff]
        %v240 = vld [vmem:[#allocation5 + $0x18] sm:$0xff]
        %vm241 = vcmask 261120
        %v243 = vsel %vm241, %v236, 0
        %245 = vmatprep.subr.mxu0 0.0
        %246 = vmatpush1.msra.mxu0 %v237
        %247 = vmatprep.subr.mxu0 0.0
        %248 = vmatpush1.msra.mxu0 %v238
        %249 = vmatprep.subr.mxu0 0.0
        %250 = vmatpush1.msra.mxu0 %v239
        %251 = vmatprep.subr.mxu0 0.0
        %252 = vmatpush1.msra.mxu0 %v240
        %253 = vmatprep.subr.mxu0 0.0
        %254 = vmatpush1.msra.mxu0 0.0
        %255 = vmatprep.subr.mxu0 0.0
        %256 = vmatpush1.msra.mxu0 0.0
        %257 = vmatprep.subr.mxu0 0.0
        %258 = vmatpush1.msra.mxu0 0.0
        %259 = vmatprep.subr.mxu0 0.0
        %260 = vmatpush1.msra.mxu0 0.0
        %261 = vmatprep.subr.mxu0 0.0
        %262 = vmatpush1.msra.mxu0 0.0
        %263 = vmatprep.subr.mxu0 0.0
        %264 = vmatpush1.msra.mxu0 0.0
        %265 = vmatprep.subr.mxu0 0.0
        %266 = vmatpush1.msra.mxu0 0.0
        %267 = vmatprep.subr.mxu0 0.0
        %268 = vmatpush1.msra.mxu0 0.0
        %269 = vmatprep.subr.mxu0 0.0
        %270 = vmatpush1.msra.mxu0 0.0
        %271 = vmatprep.subr.mxu0 0.0
        %272 = vmatpush1.msra.mxu0 0.0
        %273 = vmatprep.subr.mxu0 0.0
        %274 = vmatpush1.msra.mxu0 0.0
        %275 = vmatprep.subr.mxu0 0.0
        %276 = vmatpush1.msra.mxu0 0.0
        %277 = vmatprep.subr.mxu0 0.0
        %278 = vmatpush1.msra.mxu0 0.0
        %279 = vmatprep.subr.mxu0 0.0
        %280 = vmatpush1.msra.mxu0 0.0
        %281 = vmatprep.subr.mxu0 0.0
        %282 = vmatpush1.msra.mxu0 0.0
        %283 = vmatprep.subr.mxu0 0.0
        %284 = vmatpush1.msra.mxu0 0.0
        %285 = vmatprep.subr.mxu0 0.0
        %286 = vmatpush1.msra.mxu0 0.0
        %287 = vmatprep.subr.mxu0 0.0
        %288 = vmatpush1.msra.mxu0 0.0
        %289 = vmatprep.subr.mxu0 0.0
        %290 = vmatpush1.msra.mxu0 0.0
        %291 = vmatprep.subr.mxu0 0.0
        %292 = vmatpush1.msra.mxu0 0.0
        %293 = vmatprep.subr.mxu0 0.0
        %294 = vmatpush1.msra.mxu0 0.0
        %295 = vmatprep.subr.mxu0 0.0
        %296 = vmatpush1.msra.mxu0 0.0
        %297 = vmatprep.subr.mxu0 0.0
        %298 = vmatpush1.msra.mxu0 0.0
        %299 = vmatprep.subr.mxu0 0.0
        %300 = vmatpush1.msra.mxu0 0.0
        %301 = vmatprep.subr.mxu0 0.0
        %302 = vmatpush1.msra.mxu0 0.0
        %303 = vmatprep.subr.mxu0 0.0
        %304 = vmatpush1.msra.mxu0 0.0
        %305 = vmatprep.subr.mxu0 0.0
        %306 = vmatpush1.msra.mxu0 0.0
        %307 = vmatprep.subr.mxu0 0.0
        %308 = vmatpush1.msra.mxu0 0.0
        %309 = vmatprep.mubr.f32.mxu0 0.0
        %310 = vmatmul.mubr.f32.gmra.mrb[0].mxu0 %v243
        %v311 = vpop.f32.mrb[0].mxu0
        %v312 = vadd.f32 0.0, %v311
        %v313 = vpop.f32.mrb[0].mxu0
        %314 = vdwg.mxu0
        %v315 = vadd.f32 %v236, %v312
        %v316 = vld [vmem:[%s235] sm:$0x1]
        %v318 = vlaneseq
        %v319 = vshrl.u32 %v318, 7
        %v320 = vsub.s32 0, %v319
        %v321 = vrot.slane %v316, %v320
        %v323 = vadd.f32 %v315, %v321
        %324 = vst.msk [vmem:[%s232] sm:$0xff] %vm241, %v323
        %s325 = sand.u32 %s121, 1
        %s326 = scalar_lea.sflag [#allocation4], %s325
        %s327 = sand.u32 %s121, 1
        %s328 = smul.addr %s327, 8
        %s329 = scalar_lea.vmem [#allocation7], %s328
        // Predicated region
        $region41: #{skip_connection_linear.1} parent=31 // pred_check
          %p330 = pneg %p131
        $region42: #{skip_connection_linear.1} parent=31 // pred_check_branch
          %332 = sbr.rel (%p330) target = $region44
        $region43: #{skip_connection_linear.1} parent=31 // pred_region
          %s334 = ssub.s32 128, 128
          %335 = vsyncadd %s326, %s334
          %s336 = sadd.s32 %s26, %s25
          %s337 = smul.addr %s336, 128
          %s338 = scalar_lea.hbm %s3, %s337
          %s340 = sshll.u32 %s329, 4
          %s341 = int_to_ptr.vmem [resolvable:$true] %s340
          %343 = dma.vmem_to_hbm [thread:$0]  %s341, 128, %s338, %s326
        $region44: #{skip_connection_linear.1} parent=31 // pred_fallthru
          _
      $region32: #{skip_connection_linear.1} parent=5 // pred_fallthru
        _
      %p344 = scmp.le.s32.totalorder 2, %s16
      // Predicated region
      $region45: #{skip_connection_linear.1} parent=5 // pred_check
        %p345 = pneg %p344
      $region46: #{skip_connection_linear.1} parent=5 // pred_check_branch
        %347 = sbr.rel (%p345) target = $region48
      $region47: #{skip_connection_linear.1} parent=5 // pred_region
        %s348 = ssub.s32 %s16, 2
        // Predicated region
        $region49: #{skip_connection_linear.1} parent=47 // pred_check
          %p349 = pneg %p137
        $region50: #{skip_connection_linear.1} parent=47 // pred_check_branch
          %351 = sbr.rel (%p349) target = $region52
        $region51: #{skip_connection_linear.1} parent=47 // pred_region
          %s352 = sand.u32 %s122, 1
          %s353 = scalar_lea.sflag [#allocation4], %s352
          %s354 = sand.u32 %s122, 1
          %s355 = smul.addr %s354, 8
          %s356 = scalar_lea.vmem [#allocation7], %s355
          %357 = dma.done %s353, 128
        $region52: #{skip_connection_linear.1} parent=47 // pred_fallthru
          _
      $region48: #{skip_connection_linear.1} parent=5 // pred_fallthru
        _
    $region6: #{skip_connection_linear.1} parent=1 // loop_footer
      %s20 = sadd.s32 1, %s16
    $region7: #{skip_connection_linear.1} parent=1 // loop_footer_branch
      %15 = sbr.rel target = $region3
    $region8: #{skip_connection_linear.1} parent=1 // loop_exit
      _
    %358 = vsyncpa [#allocation3], 1
    %s359 = scalar_lea.sflag [#allocation3], 1
    %360 = vsyncpa %s359, 1
    %361 = vsyncpa [#allocation6], 1
    %362 = vsyncpa [#allocation4], 1
    %s363 = scalar_lea.sflag [#allocation4], 1
    %364 = vsyncpa %s363, 1

</llo_original>
